<compile_context>
chip_gen: v7x
topology: tpu7x:2x2x1
jax: 0.10.0
libtpu: 0.0.40
codegen_flags: <defaults>
</compile_context>

<pallas_src>
import jax
import jax.numpy as jnp
from jax.experimental import pallas as pl
from jax.experimental.pallas import tpu as pltpu


def _char_rnn_seq_kernel(tok_ref, h0_ref, xh_tab_ref, w_hh_ref, w_out_ref,
                         b_out_ref, h_seq_ref, logp_ref, h_scr):
    """One RNN timestep per grid iteration; hidden state carried in VMEM scratch."""
    t = pl.program_id(0)

    # Initialize the carried hidden state from h0 on the first step only.
    @pl.when(t == 0)
    def _():
        h_scr[...] = h0_ref[...]

    h_prev = h_scr[...]                                        # (B, H) f32

    # In-kernel embedding gather: one-hot(ids) @ xh_table on the MXU.
    # xh_table = emb @ W_rnn[:emb] + b_rnn was folded at init (valid because
    # the module applies no nonlinearity between emb and rnn), so this single
    # small matmul is the complete x-contribution to h_next, bias included.
    ids = tok_ref[0]                                           # (B, 1) int32
    n_tok = xh_tab_ref.shape[0]
    onehot = (ids == jax.lax.broadcasted_iota(
        jnp.int32, (ids.shape[0], n_tok), 1)).astype(jnp.float32)   # (B, V)
    x_contrib = jnp.dot(onehot, xh_tab_ref[...],
                        preferred_element_type=jnp.float32)    # (B, H)

    # Recurrent update (concat-free; K = H = 256 tiles exactly onto the MXU).
    # No nonlinearity, matching the PyTorch module.
    h_next = x_contrib + jnp.dot(h_prev, w_hh_ref[...],
                                 preferred_element_type=jnp.float32)
    h_scr[...] = h_next
    h_seq_ref[0] = h_next.astype(h_seq_ref.dtype)

    # Output head over the lane-padded vocab; padded columns carry a -1e30
    # bias so exp() underflows to 0 and they never affect the normalization.
    logits = jnp.dot(h_next, w_out_ref[...],
                     preferred_element_type=jnp.float32) + b_out_ref[...]
    m = jnp.max(logits, axis=-1, keepdims=True)
    shifted = logits - m
    lse = jnp.log(jnp.sum(jnp.exp(shifted), axis=-1, keepdims=True))
    logp_ref[0] = (shifted - lse).astype(logp_ref.dtype)


def char_rnn_sequence_forward(tokens, h0, xh_table, w_hh, w_out_p, b_out_p):
    """Run T CharRNNCell steps in a single pallas_call.

    tokens:   (T, B) int32 token ids
    h0:       (B, H) f32 initial hidden state
    xh_table: (num_tokens, H) f32 = emb @ W_rnn[:emb] + b_rnn (folded at init)
    w_hh:     (H, H)  f32 = W_rnn[emb:]
    w_out_p:  (H, Vp) f32, vocab lane-padded to a multiple of 128
    b_out_p:  (1, Vp) f32, padded entries = -1e30

    Returns (h_seq (T, B, H), logp_padded (T, B, Vp)).
    """
    T, B = tokens.shape
    NT, H = xh_table.shape
    Vp = w_out_p.shape[1]
    tok3 = tokens.reshape(T, B, 1).astype(jnp.int32)

    grid_spec = pltpu.PrefetchScalarGridSpec(
        num_scalar_prefetch=0,
        grid=(T,),
        in_specs=[
            # streamed per step (tiny: 4*B bytes)
            pl.BlockSpec((1, B, 1), lambda t: (t, 0, 0)),
            # everything below is VMEM-resident across all T steps
            pl.BlockSpec((B, H),   lambda t: (0, 0)),      # h0
            pl.BlockSpec((NT, H),  lambda t: (0, 0)),      # folded emb table
            pl.BlockSpec((H, H),   lambda t: (0, 0)),      # recurrent weights
            pl.BlockSpec((H, Vp),  lambda t: (0, 0)),      # output head weights
            pl.BlockSpec((1, Vp),  lambda t: (0, 0)),      # output head bias
        ],
        out_specs=(
            pl.BlockSpec((1, B, H),  lambda t: (t, 0, 0)),   # h_t, every step
            pl.BlockSpec((1, B, Vp), lambda t: (t, 0, 0)),   # logp_t (lane-dense)
        ),
        scratch_shapes=[pltpu.VMEM((B, H), jnp.float32)],    # carried hidden state
    )

    return pl.pallas_call(
        _char_rnn_seq_kernel,
        out_shape=(jax.ShapeDtypeStruct((T, B, H), jnp.float32),
                   jax.ShapeDtypeStruct((T, B, Vp), jnp.float32)),
        grid_spec=grid_spec,
        compiler_params=pltpu.CompilerParams(
            # recurrence over time through the scratch carry -> sequential axis
            dimension_semantics=("arbitrary",),
        ),
    )(tok3, h0, xh_table, w_hh, w_out_p, b_out_p)


class CharRNNCellPallas:
    """Deterministically-initialized JAX/Pallas port of the PyTorch CharRNNCell."""

    def __init__(self, num_tokens, emb_size=32, rnn_num_units=256, key=None):
        if key is None:
            key = jax.random.PRNGKey(0)
        k_emb, k_rw, k_rb, k_ow, k_ob = jax.random.split(key, 5)
        self.num_tokens = num_tokens
        self.emb_size = emb_size
        self.num_units = rnn_num_units

        # nn.Embedding default init: N(0, 1)
        self.emb = jax.random.normal(k_emb, (num_tokens, emb_size), jnp.float32)

        # nn.Linear default init: U(-1/sqrt(fan_in), 1/sqrt(fan_in)); stored (in, out)
        fan_in_rnn = emb_size + rnn_num_units
        lim = 1.0 / jnp.sqrt(fan_in_rnn)
        self.w_rnn = jax.random.uniform(
            k_rw, (fan_in_rnn, rnn_num_units), jnp.float32, -lim, lim)
        self.b_rnn = jax.random.uniform(
            k_rb, (1, rnn_num_units), jnp.float32, -lim, lim)

        lim2 = 1.0 / jnp.sqrt(rnn_num_units)
        self.w_out = jax.random.uniform(
            k_ow, (rnn_num_units, num_tokens), jnp.float32, -lim2, lim2)
        self.b_out = jax.random.uniform(
            k_ob, (1, num_tokens), jnp.float32, -lim2, lim2)

        # ---- kernel-side prepared parameters (done ONCE, not per step) ----
        w_rx = self.w_rnn[:emb_size]              # (emb, H)  input half
        self.w_hh = self.w_rnn[emb_size:]         # (H, H)    recurrent half, K=256
        # Fold embedding + input projection + rnn bias into one small table
        # (valid: no nonlinearity between emb and self.rnn in the module).
        self.xh_table = self.emb @ w_rx + self.b_rnn          # (num_tokens, H)

        # Lane-pad the vocab dim to a multiple of 128 for unmasked vst stores.
        V = num_tokens
        Vp = ((V + 127) // 128) * 128
        self.vocab_padded = Vp
        if Vp == V:
            self.w_out_p = self.w_out
            self.b_out_p = self.b_out
        else:
            self.w_out_p = jnp.pad(self.w_out, ((0, 0), (0, Vp - V)))
            self.b_out_p = jnp.pad(self.b_out, ((0, 0), (0, Vp - V)),
                                   constant_values=-1e30)

    def initial_state(self, batch_size):
        return jnp.zeros((batch_size, self.num_units), jnp.float32)

    def _run(self, tokens, h0):
        h_seq, logp_pad = char_rnn_sequence_forward(
            tokens, h0, self.xh_table, self.w_hh, self.w_out_p, self.b_out_p)
        return h_seq, logp_pad[..., :self.num_tokens]

    def __call__(self, x, h_prev):
        """Single step, matching the PyTorch forward: x (B,) int ids, h_prev (B, H)."""
        tokens = jnp.asarray(x, jnp.int32).reshape(1, -1)
        h_seq, logp_seq = self._run(tokens, h_prev)
        return h_seq[0], logp_seq[0]

    def unroll(self, tokens, h0):
        """Run all T steps of `tokens` (T, B) in one fused pallas_call."""
        return self._run(jnp.asarray(tokens, jnp.int32), h0)


def _reference_step(model, x, h_prev):
    """Pure-JAX faithful port of the PyTorch forward (for verification only)."""
    x_emb = jnp.take(model.emb, x, axis=0)
    xh = jnp.concatenate([x_emb, h_prev], axis=-1)
    h = xh @ model.w_rnn + model.b_rnn
    logits = h @ model.w_out + model.b_out
    return h, jax.nn.log_softmax(logits, axis=-1)


if __name__ == "__main__":
    num_tokens = 64
    emb_size = 32
    hidden = 256
    batch = 8
    seq_len = 16

    key = jax.random.PRNGKey(0)
    k_model, k_x, k_h = jax.random.split(key, 3)

    model = CharRNNCellPallas(num_tokens, emb_size, hidden, key=k_model)
    tokens = jax.random.randint(k_x, (seq_len, batch), 0, num_tokens, dtype=jnp.int32)
    h_rand = jax.random.normal(k_h, (batch, hidden), jnp.float32)

    # Tolerance note: the kernel re-associates the math (concat split, folded
    # embedding table, MXU pass precision), so per-step results can differ from
    # the plain-XLA reference at the ~1e-4..1e-3 level over a 16-step unroll.
    TOL = dict(atol=2e-3, rtol=2e-3)

    # ---- single step (module forward semantics) ----
    h1, logp1 = model(tokens[0], h_rand)
    jax.block_until_ready((h1, logp1))
    h1_ref, logp1_ref = _reference_step(model, tokens[0], h_rand)
    assert h1.shape == (batch, hidden) and logp1.shape == (batch, num_tokens)
    assert jnp.allclose(h1, h1_ref, **TOL)
    assert jnp.allclose(logp1, logp1_ref, **TOL)
    assert jnp.allclose(jnp.sum(jnp.exp(logp1), axis=-1), 1.0, atol=1e-3)

    # ---- fused multi-step unroll: one pallas_call for the whole sequence ----
    h0 = model.initial_state(batch)
    h_seq, logp_seq = model.unroll(tokens, h0)
    jax.block_until_ready((h_seq, logp_seq))
    assert h_seq.shape == (seq_len, batch, hidden)
    assert logp_seq.shape == (seq_len, batch, num_tokens)

    h = h0
    h_refs, lp_refs = [], []
    for t in range(seq_len):
        h, lp = _reference_step(model, tokens[t], h)
        h_refs.append(h)
        lp_refs.append(lp)
    h_seq_ref = jnp.stack(h_refs)
    logp_seq_ref = jnp.stack(lp_refs)

    assert jnp.allclose(h_seq, h_seq_ref, **TOL)
    assert jnp.allclose(logp_seq, logp_seq_ref, **TOL)
    assert jnp.allclose(jnp.sum(jnp.exp(logp_seq), axis=-1), 1.0, atol=1e-3)

    print("KERNEL_OK")
</pallas_src>

<mosaic_0001>
module attributes {stable_mosaic.version = 11 : i64} {
  func.func @_char_rnn_seq_kernel(%arg0: i32, %arg1: memref<1x8x1xi32, #tpu.memory_space<vmem>>, %arg2: memref<8x256xf32, #tpu.memory_space<vmem>>, %arg3: memref<64x256xf32, #tpu.memory_space<vmem>>, %arg4: memref<256x256xf32, #tpu.memory_space<vmem>>, %arg5: memref<256x128xf32, #tpu.memory_space<vmem>>, %arg6: memref<1x128xf32, #tpu.memory_space<vmem>>, %arg7: memref<1x8x256xf32, #tpu.memory_space<vmem>>, %arg8: memref<1x8x128xf32, #tpu.memory_space<vmem>>, %arg9: memref<8x256xf32, #tpu.memory_space<vmem>>) attributes {dimension_semantics = [#tpu.dimension_semantics<arbitrary>], iteration_bounds = array<i64: 1>, scalar_prefetch = 0 : i64, scratch_operands = 1 : i64, tpu.core_type = #tpu.core_type<tc>, window_params = [{transform_indices = @transform_0, window_bounds = array<i64: 1, 8, 1>}, {pipeline_mode = #tpu.pipeline_mode<synchronous>, transform_indices = @transform_1, window_bounds = array<i64: 8, 256>}, {pipeline_mode = #tpu.pipeline_mode<synchronous>, transform_indices = @transform_2, window_bounds = array<i64: 64, 256>}, {pipeline_mode = #tpu.pipeline_mode<synchronous>, transform_indices = @transform_3, window_bounds = array<i64: 256, 256>}, {pipeline_mode = #tpu.pipeline_mode<synchronous>, transform_indices = @transform_4, window_bounds = array<i64: 256, 128>}, {pipeline_mode = #tpu.pipeline_mode<synchronous>, transform_indices = @transform_5, window_bounds = array<i64: 1, 128>}, {transform_indices = @transform_6, window_bounds = array<i64: 1, 8, 256>}, {transform_indices = @transform_7, window_bounds = array<i64: 1, 8, 128>}]} {
    %c0_i32 = arith.constant 0 : i32
    %0 = arith.cmpi eq, %arg0, %c0_i32 : i32
    %1 = arith.extui %0 : i1 to i32
    %c0_i32_0 = arith.constant 0 : i32
    %2 = arith.cmpi ne, %1, %c0_i32_0 : i32
    scf.if %2 {
      %c0_25 = arith.constant 0 : index
      %c0_26 = arith.constant 0 : index
      %38 = vector.load %arg2[%c0_25, %c0_26] : memref<8x256xf32, #tpu.memory_space<vmem>>, vector<8x256xf32>
      %c0_27 = arith.constant 0 : index
      %c0_28 = arith.constant 0 : index
      %39 = vector.load %arg9[%c0_27, %c0_28] : memref<8x256xf32, #tpu.memory_space<vmem>>, vector<8x256xf32>
      tpu.vector_store %arg9[%c0_27, %c0_28], %38 {strides = array<i32>} : memref<8x256xf32, #tpu.memory_space<vmem>>, vector<8x256xf32>,
    } else {
    }
    %c0 = arith.constant 0 : index
    %c0_1 = arith.constant 0 : index
    %3 = vector.load %arg9[%c0, %c0_1] : memref<8x256xf32, #tpu.memory_space<vmem>>, vector<8x256xf32>
    %c0_2 = arith.constant 0 : index
    %c0_3 = arith.constant 0 : index
    %c0_4 = arith.constant 0 : index
    %4 = vector.load %arg1[%c0_2, %c0_3, %c0_4] : memref<1x8x1xi32, #tpu.memory_space<vmem>>, vector<1x8x1xi32>
    %5 = vector.shape_cast %4 : vector<1x8x1xi32> to vector<8x1xi32>
    %6 = tpu.iota {dimensions = array<i32: 1>} : vector<8x64xi32>
    %7 = vector.broadcast %5 : vector<8x1xi32> to vector<8x64xi32>
    %8 = arith.cmpi eq, %7, %6 : vector<8x64xi32>
    %9 = arith.extui %8 : vector<8x64xi1> to vector<8x64xi32>
    %10 = arith.sitofp %9 : vector<8x64xi32> to vector<8x64xf32>
    %c0_5 = arith.constant 0 : index
    %c0_6 = arith.constant 0 : index
    %11 = vector.load %arg3[%c0_5, %c0_6] : memref<64x256xf32, #tpu.memory_space<vmem>>, vector<64x256xf32>
    %cst = arith.constant dense<0.000000e+00> : vector<8x256xf32>
    %12 = tpu.matmul %10, %11, %cst {dimension_numbers = #tpu.dot_dimension_numbers<[1], [0], [0], [1], [0, 0, 1, 1], [], []>} : vector<8x64xf32>, vector<64x256xf32>, vector<8x256xf32> -> vector<8x256xf32>
    %c0_7 = arith.constant 0 : index
    %c0_8 = arith.constant 0 : index
    %13 = vector.load %arg4[%c0_7, %c0_8] : memref<256x256xf32, #tpu.memory_space<vmem>>, vector<256x256xf32>
    %cst_9 = arith.constant dense<0.000000e+00> : vector<8x256xf32>
    %14 = tpu.matmul %3, %13, %cst_9 {dimension_numbers = #tpu.dot_dimension_numbers<[1], [0], [0], [1], [0, 0, 1, 1], [], []>} : vector<8x256xf32>, vector<256x256xf32>, vector<8x256xf32> -> vector<8x256xf32>
    %15 = arith.addf %12, %14 : vector<8x256xf32>
    %c0_10 = arith.constant 0 : index
    %c0_11 = arith.constant 0 : index
    %16 = vector.load %arg9[%c0_10, %c0_11] : memref<8x256xf32, #tpu.memory_space<vmem>>, vector<8x256xf32>
    tpu.vector_store %arg9[%c0_10, %c0_11], %15 {strides = array<i32>} : memref<8x256xf32, #tpu.memory_space<vmem>>, vector<8x256xf32>,
    %c0_12 = arith.constant 0 : index
    %c0_13 = arith.constant 0 : index
    %c0_14 = arith.constant 0 : index
    %17 = vector.load %arg7[%c0_12, %c0_13, %c0_14] : memref<1x8x256xf32, #tpu.memory_space<vmem>>, vector<1x8x256xf32>
    %18 = vector.shape_cast %17 : vector<1x8x256xf32> to vector<8x256xf32>
    %19 = vector.shape_cast %15 : vector<8x256xf32> to vector<1x8x256xf32>
    tpu.vector_store %arg7[%c0_12, %c0_13, %c0_14], %19 {strides = array<i32>} : memref<1x8x256xf32, #tpu.memory_space<vmem>>, vector<1x8x256xf32>,
    %c0_15 = arith.constant 0 : index
    %c0_16 = arith.constant 0 : index
    %20 = vector.load %arg5[%c0_15, %c0_16] : memref<256x128xf32, #tpu.memory_space<vmem>>, vector<256x128xf32>
    %cst_17 = arith.constant dense<0.000000e+00> : vector<8x128xf32>
    %21 = tpu.matmul %15, %20, %cst_17 {dimension_numbers = #tpu.dot_dimension_numbers<[1], [0], [0], [1], [0, 0, 1, 1], [], []>} : vector<8x256xf32>, vector<256x128xf32>, vector<8x128xf32> -> vector<8x128xf32>
    %c0_18 = arith.constant 0 : index
    %c0_19 = arith.constant 0 : index
    %22 = vector.load %arg6[%c0_18, %c0_19] : memref<1x128xf32, #tpu.memory_space<vmem>>, vector<1x128xf32>
    %23 = vector.broadcast %22 : vector<1x128xf32> to vector<8x128xf32>
    %24 = arith.addf %21, %23 : vector<8x128xf32>
    %cst_20 = arith.constant dense<0xFF800000> : vector<8xf32>
    %25 = vector.multi_reduction <maximumf>, %24, %cst_20 [1] : vector<8x128xf32> to vector<8xf32>
    %26 = vector.shape_cast %25 : vector<8xf32> to vector<8x1xf32>
    %27 = vector.broadcast %26 : vector<8x1xf32> to vector<8x128xf32>
    %28 = arith.subf %24, %27 : vector<8x128xf32>
    %29 = math.exp %28 : vector<8x128xf32>
    %cst_21 = arith.constant dense<0.000000e+00> : vector<8xf32>
    %30 = vector.multi_reduction <add>, %29, %cst_21 [1] : vector<8x128xf32> to vector<8xf32>
    %31 = vector.shape_cast %30 : vector<8xf32> to vector<8x1xf32>
    %32 = math.log %31 : vector<8x1xf32>
    %33 = vector.broadcast %32 : vector<8x1xf32> to vector<8x128xf32>
    %34 = arith.subf %28, %33 : vector<8x128xf32>
    %c0_22 = arith.constant 0 : index
    %c0_23 = arith.constant 0 : index
    %c0_24 = arith.constant 0 : index
    %35 = vector.load %arg8[%c0_22, %c0_23, %c0_24] : memref<1x8x128xf32, #tpu.memory_space<vmem>>, vector<1x8x128xf32>
    %36 = vector.shape_cast %35 : vector<1x8x128xf32> to vector<8x128xf32>
    %37 = vector.shape_cast %34 : vector<8x128xf32> to vector<1x8x128xf32>
    tpu.vector_store %arg8[%c0_22, %c0_23, %c0_24], %37 {strides = array<i32>} : memref<1x8x128xf32, #tpu.memory_space<vmem>>, vector<1x8x128xf32>,
    return
  }
  func.func @transform_0(%arg0: i32) -> (i32, i32, i32) {
    %c0_i32 = arith.constant 0 : i32
    %c0_i32_0 = arith.constant 0 : i32
    %c0_i32_1 = arith.constant 0 : i32
    return %arg0, %c0_i32, %c0_i32_0 : i32, i32, i32
  }
  func.func @transform_1(%arg0: i32) -> (i32, i32) {
    %c0_i32 = arith.constant 0 : i32
    %c0_i32_0 = arith.constant 0 : i32
    %c0_i32_1 = arith.constant 0 : i32
    return %c0_i32, %c0_i32_0 : i32, i32
  }
  func.func @transform_2(%arg0: i32) -> (i32, i32) {
    %c0_i32 = arith.constant 0 : i32
    %c0_i32_0 = arith.constant 0 : i32
    %c0_i32_1 = arith.constant 0 : i32
    return %c0_i32, %c0_i32_0 : i32, i32
  }
  func.func @transform_3(%arg0: i32) -> (i32, i32) {
    %c0_i32 = arith.constant 0 : i32
    %c0_i32_0 = arith.constant 0 : i32
    %c0_i32_1 = arith.constant 0 : i32
    return %c0_i32, %c0_i32_0 : i32, i32
  }
  func.func @transform_4(%arg0: i32) -> (i32, i32) {
    %c0_i32 = arith.constant 0 : i32
    %c0_i32_0 = arith.constant 0 : i32
    %c0_i32_1 = arith.constant 0 : i32
    return %c0_i32, %c0_i32_0 : i32, i32
  }
  func.func @transform_5(%arg0: i32) -> (i32, i32) {
    %c0_i32 = arith.constant 0 : i32
    %c0_i32_0 = arith.constant 0 : i32
    %c0_i32_1 = arith.constant 0 : i32
    return %c0_i32, %c0_i32_0 : i32, i32
  }
  func.func @transform_6(%arg0: i32) -> (i32, i32, i32) {
    %c0_i32 = arith.constant 0 : i32
    %c0_i32_0 = arith.constant 0 : i32
    %c0_i32_1 = arith.constant 0 : i32
    return %arg0, %c0_i32, %c0_i32_0 : i32, i32, i32
  }
  func.func @transform_7(%arg0: i32) -> (i32, i32, i32) {
    %c0_i32 = arith.constant 0 : i32
    %c0_i32_0 = arith.constant 0 : i32
    %c0_i32_1 = arith.constant 0 : i32
    return %arg0, %c0_i32, %c0_i32_0 : i32, i32, i32
  }
}

</mosaic_0001>

<llo_original>
// kernel: tpu_custom_call.1
$region0: #{tpu_custom_call.1}
  #allocation0 [shape = 'u32[]', space=smem, size = 0x4, offset = 0x4, fixed_abs, tag = 'smem constant byte address 0x4 - core index']
  #allocation1 [shape = 'u32[144,128]{1,0:T(1,128)}', space=vmem, size = 0x12000, scoped, tag = 'internal scratch']
  #allocation2 [shape = 'f32[8,256]{1,0:T(8,128)}', space=vmem, size = 0x2000, scoped, tag = 'scratch operand']
  %s0 = inlined_call_operand.vmem [shape: s32[1,8,1], index: 0, kind: input, shape index: {}]
  %s1 = inlined_call_operand.hbm [shape: f32[8,256], index: 1, kind: input, shape index: {}]
  %s2 = inlined_call_operand.hbm [shape: f32[64,256], index: 2, kind: input, shape index: {}]
  %s3 = inlined_call_operand.hbm [shape: f32[256,256], index: 3, kind: input, shape index: {}]
  %s4 = inlined_call_operand.hbm [shape: f32[256,128], index: 4, kind: input, shape index: {}]
  %s5 = inlined_call_operand.vmem [shape: f32[1,128], index: 5, kind: input, shape index: {}]
  %s6 = inlined_call_operand.hbm [shape: f32[1,8,256], index: 6, kind: output, shape index: {0}]
  %s7 = inlined_call_operand.hbm [shape: f32[1,8,128], index: 7, kind: output, shape index: {1}]
  %8 = xla_tuple %s6, %s7
  %s9 = sld [smem:[#allocation0]]
  $region62: #{tpu_custom_call.1} parent=0
    _
  %s11 = ssub.s32 1, %s9
  %s12 = scalar_select 0, %s11, %s9
  $region1: #{tpu_custom_call.1} parent=0
    #allocation3 [shape = 'u8[8192]{0}', space=vmem, size = 0x2000, scoped, tag = 'input window, operand 1, single buffered']
    #allocation4 [shape = 's32[1]{0}', space=sflag, size = 0x4, scoped, tag = 'scoped memory for tpu_custom_call.1']
    #allocation5 [shape = 's32[1]{0}', space=sflag, size = 0x4, scoped, tag = 'scoped memory for tpu_custom_call.1']
    #allocation6 [shape = 'u8[65536]{0}', space=vmem, size = 0x10000, scoped, tag = 'input window, operand 2, single buffered']
    #allocation7 [shape = 's32[1]{0}', space=sflag, size = 0x4, scoped, tag = 'scoped memory for tpu_custom_call.1']
    #allocation8 [shape = 'u8[262144]{0}', space=vmem, size = 0x40000, scoped, tag = 'input window, operand 3, single buffered']
    #allocation9 [shape = 'u8[131072]{0}', space=vmem, size = 0x20000, scoped, tag = 'input window, operand 4, single buffered']
    #allocation10 [shape = 's32[1]{0}', space=sflag, size = 0x4, scoped, tag = 'scoped memory for tpu_custom_call.1']
    #allocation11 [shape = 'u8[8192]{0}', space=vmem, size = 0x2000, scoped, tag = 'output window, operand 0, single buffered']
    #allocation12 [shape = 'u8[4096]{0}', space=vmem, size = 0x1000, scoped, tag = 'output window, operand 1, single buffered']
    #allocation13 [shape = 's32[1]{0}', space=sflag, size = 0x4, scoped, tag = 'scoped memory for tpu_custom_call.1']
    %13 = vsyncpa [#allocation4], 0
    %14 = vsyncpa [#allocation7], 0
    %15 = vsyncpa [#allocation10], 0
    %16 = vsyncpa [#allocation5], 0
    %17 = vsyncpa [#allocation13], 0
    // Predicated region
    $region2: #{tpu_custom_call.1} parent=1 // pred_check
      _
    $region3: #{tpu_custom_call.1} parent=1 // pred_check_branch
      %19 = sbr.rel (0) target = $region5
    $region4: #{tpu_custom_call.1} parent=1 // pred_region
      _
    $region5: #{tpu_custom_call.1} parent=1 // pred_fallthru
      _
    // Predicated region
    $region6: #{tpu_custom_call.1} parent=1 // pred_check
      _
    $region7: #{tpu_custom_call.1} parent=1 // pred_check_branch
      %21 = sbr.rel (0) target = $region9
    $region8: #{tpu_custom_call.1} parent=1 // pred_region
      %s23 = ssub.s32 256, 256
      %24 = vsyncadd [#allocation4], %s23
      %s26 = sshll.u32 [#allocation3], 4
      %s27 = int_to_ptr.vmem [resolvable:$true] %s26
      %29 = dma.hbm_to_vmem [thread:$0]  %s1, 256, %s27, [#allocation4]
    $region9: #{tpu_custom_call.1} parent=1 // pred_fallthru
      _
    // Predicated region
    $region10: #{tpu_custom_call.1} parent=1 // pred_check
      _
    $region11: #{tpu_custom_call.1} parent=1 // pred_check_branch
      %31 = sbr.rel (0) target = $region13
    $region12: #{tpu_custom_call.1} parent=1 // pred_region
      %s33 = ssub.s32 2048, 2048
      %34 = vsyncadd [#allocation7], %s33
      %s35 = sshll.u32 [#allocation6], 4
      %s36 = int_to_ptr.vmem [resolvable:$true] %s35
      %41 = dma.hbm_to_vmem [thread:$0]  %s2, 2048, %s36, [#allocation7], 256, 256, 16
    $region13: #{tpu_custom_call.1} parent=1 // pred_fallthru
      _
    // Predicated region
    $region14: #{tpu_custom_call.1} parent=1 // pred_check
      _
    $region15: #{tpu_custom_call.1} parent=1 // pred_check_branch
      %43 = sbr.rel (0) target = $region17
    $region16: #{tpu_custom_call.1} parent=1 // pred_region
      %s45 = ssub.s32 8192, 8192
      %46 = vsyncadd [#allocation7], %s45
      %s47 = sshll.u32 [#allocation8], 4
      %s48 = int_to_ptr.vmem [resolvable:$true] %s47
      %53 = dma.hbm_to_vmem [thread:$0]  %s3, 8192, %s48, [#allocation7], 256, 256, 16
    $region17: #{tpu_custom_call.1} parent=1 // pred_fallthru
      _
    // Predicated region
    $region18: #{tpu_custom_call.1} parent=1 // pred_check
      _
    $region19: #{tpu_custom_call.1} parent=1 // pred_check_branch
      %55 = sbr.rel (0) target = $region21
    $region20: #{tpu_custom_call.1} parent=1 // pred_region
      %s57 = ssub.s32 4096, 4096
      %58 = vsyncadd [#allocation10], %s57
      %s59 = sshll.u32 [#allocation9], 4
      %s60 = int_to_ptr.vmem [resolvable:$true] %s59
      %65 = dma.hbm_to_vmem [thread:$0]  %s4, 4096, %s60, [#allocation10], 128, 128, 8
    $region21: #{tpu_custom_call.1} parent=1 // pred_fallthru
      _
    // Predicated region
    $region22: #{tpu_custom_call.1} parent=1 // pred_check
      _
    $region23: #{tpu_custom_call.1} parent=1 // pred_check_branch
      %67 = sbr.rel (0) target = $region25
    $region24: #{tpu_custom_call.1} parent=1 // pred_region
      _
    $region25: #{tpu_custom_call.1} parent=1 // pred_fallthru
      _
    // Predicated region
    $region26: #{tpu_custom_call.1} parent=1 // pred_check
      _
    $region27: #{tpu_custom_call.1} parent=1 // pred_check_branch
      %69 = sbr.rel (0) target = $region29
    $region28: #{tpu_custom_call.1} parent=1 // pred_region
      %70 = dma.done [#allocation4], 256
    $region29: #{tpu_custom_call.1} parent=1 // pred_fallthru
      _
    // Predicated region
    $region30: #{tpu_custom_call.1} parent=1 // pred_check
      _
    $region31: #{tpu_custom_call.1} parent=1 // pred_check_branch
      %72 = sbr.rel (0) target = $region33
    $region32: #{tpu_custom_call.1} parent=1 // pred_region
      %73 = dma.done [#allocation7], 2048
    $region33: #{tpu_custom_call.1} parent=1 // pred_fallthru
      _
    // Predicated region
    $region34: #{tpu_custom_call.1} parent=1 // pred_check
      _
    $region35: #{tpu_custom_call.1} parent=1 // pred_check_branch
      %75 = sbr.rel (0) target = $region37
    $region36: #{tpu_custom_call.1} parent=1 // pred_region
      %76 = dma.done [#allocation7], 8192
    $region37: #{tpu_custom_call.1} parent=1 // pred_fallthru
      _
    // Predicated region
    $region38: #{tpu_custom_call.1} parent=1 // pred_check
      _
    $region39: #{tpu_custom_call.1} parent=1 // pred_check_branch
      %78 = sbr.rel (0) target = $region41
    $region40: #{tpu_custom_call.1} parent=1 // pred_region
      %79 = dma.done [#allocation10], 4096
    $region41: #{tpu_custom_call.1} parent=1 // pred_fallthru
      _
    %p80 = scmp.eq.s32.totalorder 0, 0
    // Predicated region
    $region42: #{tpu_custom_call.1} parent=1 // pred_check
      %p81 = pneg %p80
    $region43: #{tpu_custom_call.1} parent=1 // pred_check_branch
      %83 = sbr.rel (%p81) target = $region45
    $region44: #{tpu_custom_call.1} parent=1 // pred_region
      %v84 = vld [vmem:[#allocation3] sm:$0xff]
      %v85 = vld [vmem:[#allocation3 + $0x8] sm:$0xff]
      %86 = vst [vmem:[#allocation2] sm:$0xff] %v84
      %87 = vst [vmem:[#allocation2 + $0x8] sm:$0xff] %v85
    $region45: #{tpu_custom_call.1} parent=1 // pred_fallthru
      _
    %v88 = vld [vmem:[#allocation2] sm:$0xff]
    %v89 = vld [vmem:[#allocation2 + $0x8] sm:$0xff]
    %v90 = vld [vmem:[%s0] sm:$0xff]
    %v91 = vlaneseq
    %v92 = vand.u32 %v91, 127
    %93 = vset.pattern.permute.xlu0 0
    %94 = vperm.xlu0 %93, %v90
    %v95 = vpop.permute.xlu0 %94
    %vm96 = vcmp.eq.s32.totalorder %v95, %v92
    %v97 = vsel %vm96, 1, 0
    %v98 = vcvt.s32.f32 %v97
    %v99 = vld [vmem:[#allocation6] sm:$0xff]
    %v100 = vld [vmem:[#allocation6 + $0x8] sm:$0xff]
    %v101 = vld [vmem:[#allocation6 + $0x10] sm:$0xff]
    %v102 = vld [vmem:[#allocation6 + $0x18] sm:$0xff]
    %v103 = vld [vmem:[#allocation6 + $0x20] sm:$0xff]
    %v104 = vld [vmem:[#allocation6 + $0x28] sm:$0xff]
    %v105 = vld [vmem:[#allocation6 + $0x30] sm:$0xff]
    %v106 = vld [vmem:[#allocation6 + $0x38] sm:$0xff]
    %v107 = vld [vmem:[#allocation6 + $0x40] sm:$0xff]
    %v108 = vld [vmem:[#allocation6 + $0x48] sm:$0xff]
    %v109 = vld [vmem:[#allocation6 + $0x50] sm:$0xff]
    %v110 = vld [vmem:[#allocation6 + $0x58] sm:$0xff]
    %v111 = vld [vmem:[#allocation6 + $0x60] sm:$0xff]
    %v112 = vld [vmem:[#allocation6 + $0x68] sm:$0xff]
    %v113 = vld [vmem:[#allocation6 + $0x70] sm:$0xff]
    %v114 = vld [vmem:[#allocation6 + $0x78] sm:$0xff]
    %v115 = vld [vmem:[#allocation8] sm:$0xff]
    %v116 = vld [vmem:[#allocation8 + $0x8] sm:$0xff]
    %v117 = vld [vmem:[#allocation8 + $0x10] sm:$0xff]
    %v118 = vld [vmem:[#allocation8 + $0x18] sm:$0xff]
    %v119 = vld [vmem:[#allocation8 + $0x20] sm:$0xff]
    %v120 = vld [vmem:[#allocation8 + $0x28] sm:$0xff]
    %v121 = vld [vmem:[#allocation8 + $0x30] sm:$0xff]
    %v122 = vld [vmem:[#allocation8 + $0x38] sm:$0xff]
    %v123 = vld [vmem:[#allocation8 + $0x40] sm:$0xff]
    %v124 = vld [vmem:[#allocation8 + $0x48] sm:$0xff]
    %v125 = vld [vmem:[#allocation8 + $0x50] sm:$0xff]
    %v126 = vld [vmem:[#allocation8 + $0x58] sm:$0xff]
    %v127 = vld [vmem:[#allocation8 + $0x60] sm:$0xff]
    %v128 = vld [vmem:[#allocation8 + $0x68] sm:$0xff]
    %v129 = vld [vmem:[#allocation8 + $0x70] sm:$0xff]
    %v130 = vld [vmem:[#allocation8 + $0x78] sm:$0xff]
    %v131 = vld [vmem:[#allocation8 + $0x80] sm:$0xff]
    %v132 = vld [vmem:[#allocation8 + $0x88] sm:$0xff]
    %v133 = vld [vmem:[#allocation8 + $0x90] sm:$0xff]
    %v134 = vld [vmem:[#allocation8 + $0x98] sm:$0xff]
    %v135 = vld [vmem:[#allocation8 + $0xa0] sm:$0xff]
    %v136 = vld [vmem:[#allocation8 + $0xa8] sm:$0xff]
    %v137 = vld [vmem:[#allocation8 + $0xb0] sm:$0xff]
    %v138 = vld [vmem:[#allocation8 + $0xb8] sm:$0xff]
    %v139 = vld [vmem:[#allocation8 + $0xc0] sm:$0xff]
    %v140 = vld [vmem:[#allocation8 + $0xc8] sm:$0xff]
    %v141 = vld [vmem:[#allocation8 + $0xd0] sm:$0xff]
    %v142 = vld [vmem:[#allocation8 + $0xd8] sm:$0xff]
    %v143 = vld [vmem:[#allocation8 + $0xe0] sm:$0xff]
    %v144 = vld [vmem:[#allocation8 + $0xe8] sm:$0xff]
    %v145 = vld [vmem:[#allocation8 + $0xf0] sm:$0xff]
    %v146 = vld [vmem:[#allocation8 + $0xf8] sm:$0xff]
    %v147 = vld [vmem:[#allocation8 + $0x100] sm:$0xff]
    %v148 = vld [vmem:[#allocation8 + $0x108] sm:$0xff]
    %v149 = vld [vmem:[#allocation8 + $0x110] sm:$0xff]
    %v150 = vld [vmem:[#allocation8 + $0x118] sm:$0xff]
    %v151 = vld [vmem:[#allocation8 + $0x120] sm:$0xff]
    %v152 = vld [vmem:[#allocation8 + $0x128] sm:$0xff]
    %v153 = vld [vmem:[#allocation8 + $0x130] sm:$0xff]
    %v154 = vld [vmem:[#allocation8 + $0x138] sm:$0xff]
    %v155 = vld [vmem:[#allocation8 + $0x140] sm:$0xff]
    %v156 = vld [vmem:[#allocation8 + $0x148] sm:$0xff]
    %v157 = vld [vmem:[#allocation8 + $0x150] sm:$0xff]
    %v158 = vld [vmem:[#allocation8 + $0x158] sm:$0xff]
    %v159 = vld [vmem:[#allocation8 + $0x160] sm:$0xff]
    %v160 = vld [vmem:[#allocation8 + $0x168] sm:$0xff]
    %v161 = vld [vmem:[#allocation8 + $0x170] sm:$0xff]
    %v162 = vld [vmem:[#allocation8 + $0x178] sm:$0xff]
    %v163 = vld [vmem:[#allocation8 + $0x180] sm:$0xff]
    %v164 = vld [vmem:[#allocation8 + $0x188] sm:$0xff]
    %v165 = vld [vmem:[#allocation8 + $0x190] sm:$0xff]
    %v166 = vld [vmem:[#allocation8 + $0x198] sm:$0xff]
    %v167 = vld [vmem:[#allocation8 + $0x1a0] sm:$0xff]
    %v168 = vld [vmem:[#allocation8 + $0x1a8] sm:$0xff]
    %v169 = vld [vmem:[#allocation8 + $0x1b0] sm:$0xff]
    %v170 = vld [vmem:[#allocation8 + $0x1b8] sm:$0xff]
    %v171 = vld [vmem:[#allocation8 + $0x1c0] sm:$0xff]
    %v172 = vld [vmem:[#allocation8 + $0x1c8] sm:$0xff]
    %v173 = vld [vmem:[#allocation8 + $0x1d0] sm:$0xff]
    %v174 = vld [vmem:[#allocation8 + $0x1d8] sm:$0xff]
    %v175 = vld [vmem:[#allocation8 + $0x1e0] sm:$0xff]
    %v176 = vld [vmem:[#allocation8 + $0x1e8] sm:$0xff]
    %v177 = vld [vmem:[#allocation8 + $0x1f0] sm:$0xff]
    %v178 = vld [vmem:[#allocation8 + $0x1f8] sm:$0xff]
    %179 = vmatprep.subr.mxu0 %v116
    %180 = vmatpush1.msra.mxu0 %v115
    %181 = vmatprep.subr.mxu0 %v118
    %182 = vmatpush1.msra.mxu0 %v117
    %183 = vmatprep.subr.mxu0 %v120
    %184 = vmatpush1.msra.mxu0 %v119
    %185 = vmatprep.subr.mxu0 %v122
    %186 = vmatpush1.msra.mxu0 %v121
    %187 = vmatprep.subr.mxu0 %v124
    %188 = vmatpush1.msra.mxu0 %v123
    %189 = vmatprep.subr.mxu0 %v126
    %190 = vmatpush1.msra.mxu0 %v125
    %191 = vmatprep.subr.mxu0 %v128
    %192 = vmatpush1.msra.mxu0 %v127
    %193 = vmatprep.subr.mxu0 %v130
    %194 = vmatpush1.msra.mxu0 %v129
    %195 = vmatprep.subr.mxu0 %v132
    %196 = vmatpush1.msra.mxu0 %v131
    %197 = vmatprep.subr.mxu0 %v134
    %198 = vmatpush1.msra.mxu0 %v133
    %199 = vmatprep.subr.mxu0 %v136
    %200 = vmatpush1.msra.mxu0 %v135
    %201 = vmatprep.subr.mxu0 %v138
    %202 = vmatpush1.msra.mxu0 %v137
    %203 = vmatprep.subr.mxu0 %v140
    %204 = vmatpush1.msra.mxu0 %v139
    %205 = vmatprep.subr.mxu0 %v142
    %206 = vmatpush1.msra.mxu0 %v141
    %207 = vmatprep.subr.mxu0 %v144
    %208 = vmatpush1.msra.mxu0 %v143
    %209 = vmatprep.subr.mxu0 %v146
    %210 = vmatpush1.msra.mxu0 %v145
    %211 = vmatprep.subr.mxu0 %v148
    %212 = vmatpush1.msra.mxu0 %v147
    %213 = vmatprep.subr.mxu0 %v150
    %214 = vmatpush1.msra.mxu0 %v149
    %215 = vmatprep.subr.mxu0 %v152
    %216 = vmatpush1.msra.mxu0 %v151
    %217 = vmatprep.subr.mxu0 %v154
    %218 = vmatpush1.msra.mxu0 %v153
    %219 = vmatprep.subr.mxu0 %v156
    %220 = vmatpush1.msra.mxu0 %v155
    %221 = vmatprep.subr.mxu0 %v158
    %222 = vmatpush1.msra.mxu0 %v157
    %223 = vmatprep.subr.mxu0 %v160
    %224 = vmatpush1.msra.mxu0 %v159
    %225 = vmatprep.subr.mxu0 %v162
    %226 = vmatpush1.msra.mxu0 %v161
    %227 = vmatprep.subr.mxu0 %v164
    %228 = vmatpush1.msra.mxu0 %v163
    %229 = vmatprep.subr.mxu0 %v166
    %230 = vmatpush1.msra.mxu0 %v165
    %231 = vmatprep.subr.mxu0 %v168
    %232 = vmatpush1.msra.mxu0 %v167
    %233 = vmatprep.subr.mxu0 %v170
    %234 = vmatpush1.msra.mxu0 %v169
    %235 = vmatprep.subr.mxu0 %v172
    %236 = vmatpush1.msra.mxu0 %v171
    %237 = vmatprep.subr.mxu0 %v174
    %238 = vmatpush1.msra.mxu0 %v173
    %239 = vmatprep.subr.mxu0 %v176
    %240 = vmatpush1.msra.mxu0 %v175
    %241 = vmatprep.subr.mxu0 %v178
    %242 = vmatpush1.msra.mxu0 %v177
    %243 = vmatprep.mubr.f32.mxu0 %v89
    %244 = vmatmul.mubr.f32.gmra.mrb[0].mxu0 %v88
    %v245 = vpop.f32.mrb[0].mxu0
    %v246 = vadd.f32 0.0, %v245
    %v247 = vpop.f32.mrb[0].mxu0
    %v248 = vadd.f32 0.0, %v247
    %249 = vdwg.mxu0
    %vm250 = vcmask 523264
    %v252 = vsel %vm250, %v98, 0
    %254 = vmatprep.subr.mxu0 %v100
    %255 = vmatpush1.msra.mxu0 %v99
    %256 = vmatprep.subr.mxu0 %v102
    %257 = vmatpush1.msra.mxu0 %v101
    %258 = vmatprep.subr.mxu0 %v104
    %259 = vmatpush1.msra.mxu0 %v103
    %260 = vmatprep.subr.mxu0 %v106
    %261 = vmatpush1.msra.mxu0 %v105
    %262 = vmatprep.subr.mxu0 %v108
    %263 = vmatpush1.msra.mxu0 %v107
    %264 = vmatprep.subr.mxu0 %v110
    %265 = vmatpush1.msra.mxu0 %v109
    %266 = vmatprep.subr.mxu0 %v112
    %267 = vmatpush1.msra.mxu0 %v111
    %268 = vmatprep.subr.mxu0 %v114
    %269 = vmatpush1.msra.mxu0 %v113
    %270 = vmatprep.subr.mxu0 0.0
    %271 = vmatpush1.msra.mxu0 0.0
    %272 = vmatprep.subr.mxu0 0.0
    %273 = vmatpush1.msra.mxu0 0.0
    %274 = vmatprep.subr.mxu0 0.0
    %275 = vmatpush1.msra.mxu0 0.0
    %276 = vmatprep.subr.mxu0 0.0
    %277 = vmatpush1.msra.mxu0 0.0
    %278 = vmatprep.subr.mxu0 0.0
    %279 = vmatpush1.msra.mxu0 0.0
    %280 = vmatprep.subr.mxu0 0.0
    %281 = vmatpush1.msra.mxu0 0.0
    %282 = vmatprep.subr.mxu0 0.0
    %283 = vmatpush1.msra.mxu0 0.0
    %284 = vmatprep.subr.mxu0 0.0
    %285 = vmatpush1.msra.mxu0 0.0
    %286 = vmatprep.subr.mxu0 0.0
    %287 = vmatpush1.msra.mxu0 0.0
    %288 = vmatprep.subr.mxu0 0.0
    %289 = vmatpush1.msra.mxu0 0.0
    %290 = vmatprep.subr.mxu0 0.0
    %291 = vmatpush1.msra.mxu0 0.0
    %292 = vmatprep.subr.mxu0 0.0
    %293 = vmatpush1.msra.mxu0 0.0
    %294 = vmatprep.subr.mxu0 0.0
    %295 = vmatpush1.msra.mxu0 0.0
    %296 = vmatprep.subr.mxu0 0.0
    %297 = vmatpush1.msra.mxu0 0.0
    %298 = vmatprep.subr.mxu0 0.0
    %299 = vmatpush1.msra.mxu0 0.0
    %300 = vmatprep.subr.mxu0 0.0
    %301 = vmatpush1.msra.mxu0 0.0
    %302 = vmatprep.subr.mxu0 0.0
    %303 = vmatpush1.msra.mxu0 0.0
    %304 = vmatprep.subr.mxu0 0.0
    %305 = vmatpush1.msra.mxu0 0.0
    %306 = vmatprep.subr.mxu0 0.0
    %307 = vmatpush1.msra.mxu0 0.0
    %308 = vmatprep.subr.mxu0 0.0
    %309 = vmatpush1.msra.mxu0 0.0
    %310 = vmatprep.subr.mxu0 0.0
    %311 = vmatpush1.msra.mxu0 0.0
    %312 = vmatprep.subr.mxu0 0.0
    %313 = vmatpush1.msra.mxu0 0.0
    %314 = vmatprep.subr.mxu0 0.0
    %315 = vmatpush1.msra.mxu0 0.0
    %316 = vmatprep.subr.mxu0 0.0
    %317 = vmatpush1.msra.mxu0 0.0
    %318 = vmatprep.mubr.f32.mxu0 0.0
    %319 = vmatmul.mubr.f32.gmra.mrb[0].mxu0 %v252
    %v320 = vpop.f32.mrb[0].mxu0
    %v321 = vadd.f32 %v246, %v320
    %v322 = vpop.f32.mrb[0].mxu0
    %v323 = vadd.f32 %v248, %v322
    %324 = vdwg.mxu0
    %325 = vst [vmem:[#allocation2] sm:$0xff] %v321
    %326 = vst [vmem:[#allocation2 + $0x8] sm:$0xff] %v323
    %327 = vst [vmem:[#allocation11] sm:$0xff] %v321
    %328 = vst [vmem:[#allocation11 + $0x8] sm:$0xff] %v323
    %v329 = vld [vmem:[#allocation9] sm:$0xff]
    %v330 = vld [vmem:[#allocation9 + $0x8] sm:$0xff]
    %v331 = vld [vmem:[#allocation9 + $0x10] sm:$0xff]
    %v332 = vld [vmem:[#allocation9 + $0x18] sm:$0xff]
    %v333 = vld [vmem:[#allocation9 + $0x20] sm:$0xff]
    %v334 = vld [vmem:[#allocation9 + $0x28] sm:$0xff]
    %v335 = vld [vmem:[#allocation9 + $0x30] sm:$0xff]
    %v336 = vld [vmem:[#allocation9 + $0x38] sm:$0xff]
    %v337 = vld [vmem:[#allocation9 + $0x40] sm:$0xff]
    %v338 = vld [vmem:[#allocation9 + $0x48] sm:$0xff]
    %v339 = vld [vmem:[#allocation9 + $0x50] sm:$0xff]
    %v340 = vld [vmem:[#allocation9 + $0x58] sm:$0xff]
    %v341 = vld [vmem:[#allocation9 + $0x60] sm:$0xff]
    %v342 = vld [vmem:[#allocation9 + $0x68] sm:$0xff]
    %v343 = vld [vmem:[#allocation9 + $0x70] sm:$0xff]
    %v344 = vld [vmem:[#allocation9 + $0x78] sm:$0xff]
    %v345 = vld [vmem:[#allocation9 + $0x80] sm:$0xff]
    %v346 = vld [vmem:[#allocation9 + $0x88] sm:$0xff]
    %v347 = vld [vmem:[#allocation9 + $0x90] sm:$0xff]
    %v348 = vld [vmem:[#allocation9 + $0x98] sm:$0xff]
    %v349 = vld [vmem:[#allocation9 + $0xa0] sm:$0xff]
    %v350 = vld [vmem:[#allocation9 + $0xa8] sm:$0xff]
    %v351 = vld [vmem:[#allocation9 + $0xb0] sm:$0xff]
    %v352 = vld [vmem:[#allocation9 + $0xb8] sm:$0xff]
    %v353 = vld [vmem:[#allocation9 + $0xc0] sm:$0xff]
    %v354 = vld [vmem:[#allocation9 + $0xc8] sm:$0xff]
    %v355 = vld [vmem:[#allocation9 + $0xd0] sm:$0xff]
    %v356 = vld [vmem:[#allocation9 + $0xd8] sm:$0xff]
    %v357 = vld [vmem:[#allocation9 + $0xe0] sm:$0xff]
    %v358 = vld [vmem:[#allocation9 + $0xe8] sm:$0xff]
    %v359 = vld [vmem:[#allocation9 + $0xf0] sm:$0xff]
    %v360 = vld [vmem:[#allocation9 + $0xf8] sm:$0xff]
    %v361 = vld [vmem:[%s5] sm:$0x1]
    %v363 = vlaneseq
    %v364 = vshrl.u32 %v363, 7
    %v365 = vsub.s32 0, %v364
    %v366 = vrot.slane %v361, %v365
    %368 = vmatprep.subr.mxu0 0.0
    %369 = vmatpush1.msra.mxu0 %v329
    %370 = vmatprep.subr.mxu0 0.0
    %371 = vmatpush1.msra.mxu0 %v330
    %372 = vmatprep.subr.mxu0 0.0
    %373 = vmatpush1.msra.mxu0 %v331
    %374 = vmatprep.subr.mxu0 0.0
    %375 = vmatpush1.msra.mxu0 %v332
    %376 = vmatprep.subr.mxu0 0.0
    %377 = vmatpush1.msra.mxu0 %v333
    %378 = vmatprep.subr.mxu0 0.0
    %379 = vmatpush1.msra.mxu0 %v334
    %380 = vmatprep.subr.mxu0 0.0
    %381 = vmatpush1.msra.mxu0 %v335
    %382 = vmatprep.subr.mxu0 0.0
    %383 = vmatpush1.msra.mxu0 %v336
    %384 = vmatprep.subr.mxu0 0.0
    %385 = vmatpush1.msra.mxu0 %v337
    %386 = vmatprep.subr.mxu0 0.0
    %387 = vmatpush1.msra.mxu0 %v338
    %388 = vmatprep.subr.mxu0 0.0
    %389 = vmatpush1.msra.mxu0 %v339
    %390 = vmatprep.subr.mxu0 0.0
    %391 = vmatpush1.msra.mxu0 %v340
    %392 = vmatprep.subr.mxu0 0.0
    %393 = vmatpush1.msra.mxu0 %v341
    %394 = vmatprep.subr.mxu0 0.0
    %395 = vmatpush1.msra.mxu0 %v342
    %396 = vmatprep.subr.mxu0 0.0
    %397 = vmatpush1.msra.mxu0 %v343
    %398 = vmatprep.subr.mxu0 0.0
    %399 = vmatpush1.msra.mxu0 %v344
    %400 = vmatprep.subr.mxu0 0.0
    %401 = vmatpush1.msra.mxu0 %v345
    %402 = vmatprep.subr.mxu0 0.0
    %403 = vmatpush1.msra.mxu0 %v346
    %404 = vmatprep.subr.mxu0 0.0
    %405 = vmatpush1.msra.mxu0 %v347
    %406 = vmatprep.subr.mxu0 0.0
    %407 = vmatpush1.msra.mxu0 %v348
    %408 = vmatprep.subr.mxu0 0.0
    %409 = vmatpush1.msra.mxu0 %v349
    %410 = vmatprep.subr.mxu0 0.0
    %411 = vmatpush1.msra.mxu0 %v350
    %412 = vmatprep.subr.mxu0 0.0
    %413 = vmatpush1.msra.mxu0 %v351
    %414 = vmatprep.subr.mxu0 0.0
    %415 = vmatpush1.msra.mxu0 %v352
    %416 = vmatprep.subr.mxu0 0.0
    %417 = vmatpush1.msra.mxu0 %v353
    %418 = vmatprep.subr.mxu0 0.0
    %419 = vmatpush1.msra.mxu0 %v354
    %420 = vmatprep.subr.mxu0 0.0
    %421 = vmatpush1.msra.mxu0 %v355
    %422 = vmatprep.subr.mxu0 0.0
    %423 = vmatpush1.msra.mxu0 %v356
    %424 = vmatprep.subr.mxu0 0.0
    %425 = vmatpush1.msra.mxu0 %v357
    %426 = vmatprep.subr.mxu0 0.0
    %427 = vmatpush1.msra.mxu0 %v358
    %428 = vmatprep.subr.mxu0 0.0
    %429 = vmatpush1.msra.mxu0 %v359
    %430 = vmatprep.subr.mxu0 0.0
    %431 = vmatpush1.msra.mxu0 %v360
    %432 = vmatprep.mubr.f32.mxu0 %v323
    %433 = vmatmul.mubr.f32.gmra.mrb[0].mxu0 %v321
    %v434 = vpop.f32.mrb[0].mxu0
    %v435 = vadd.f32 %v366, %v434
    %v436 = vpop.f32.mrb[0].mxu0
    %437 = vdwg.mxu0
    %438 = vmax.xlane.f32.xlu0 %v435
    %v439 = vpop.xlane.xlu0 %438
    %v440 = vsub.f32 %v435, %v439
    %v441 = vmul.f32 %v440, 1.442695
    %v442 = vpow.pop %v441
    %443 = vadd.xlane.f32.xlu0 %v442
    %v444 = vpop.xlane.xlu0 %443
    %v445 = vlog2.pop %v444
    %v446 = vmul.f32 %v445, 0.6931472
    %v447 = vsub.f32 %v440, %v446
    %448 = vst [vmem:[#allocation12] sm:$0xff] %v447
    // Predicated region
    $region46: #{tpu_custom_call.1} parent=1 // pred_check
      _
    $region47: #{tpu_custom_call.1} parent=1 // pred_check_branch
      %450 = sbr.rel (0) target = $region49
    $region48: #{tpu_custom_call.1} parent=1 // pred_region
      %s452 = ssub.s32 256, 256
      %453 = vsyncadd [#allocation5], %s452
      %s455 = sshll.u32 [#allocation11], 4
      %s456 = int_to_ptr.vmem [resolvable:$true] %s455
      %458 = dma.vmem_to_hbm [thread:$0]  %s456, 256, %s6, [#allocation5]
    $region49: #{tpu_custom_call.1} parent=1 // pred_fallthru
      _
    // Predicated region
    $region50: #{tpu_custom_call.1} parent=1 // pred_check
      _
    $region51: #{tpu_custom_call.1} parent=1 // pred_check_branch
      %460 = sbr.rel (0) target = $region53
    $region52: #{tpu_custom_call.1} parent=1 // pred_region
      %s462 = ssub.s32 128, 128
      %463 = vsyncadd [#allocation13], %s462
      %s465 = sshll.u32 [#allocation12], 4
      %s466 = int_to_ptr.vmem [resolvable:$true] %s465
      %468 = dma.vmem_to_hbm [thread:$0]  %s466, 128, %s7, [#allocation13]
    $region53: #{tpu_custom_call.1} parent=1 // pred_fallthru
      _
    // Predicated region
    $region54: #{tpu_custom_call.1} parent=1 // pred_check
      _
    $region55: #{tpu_custom_call.1} parent=1 // pred_check_branch
      %470 = sbr.rel (0) target = $region57
    $region56: #{tpu_custom_call.1} parent=1 // pred_region
      %471 = dma.done [#allocation5], 256
    $region57: #{tpu_custom_call.1} parent=1 // pred_fallthru
      _
    // Predicated region
    $region58: #{tpu_custom_call.1} parent=1 // pred_check
      _
    $region59: #{tpu_custom_call.1} parent=1 // pred_check_branch
      %473 = sbr.rel (0) target = $region61
    $region60: #{tpu_custom_call.1} parent=1 // pred_region
      %474 = dma.done [#allocation13], 128
    $region61: #{tpu_custom_call.1} parent=1 // pred_fallthru
      _
    %475 = vsyncpa [#allocation4], 1
    %476 = vsyncpa [#allocation7], 1
    %477 = vsyncpa [#allocation10], 1
    %478 = vsyncpa [#allocation5], 1
    %479 = vsyncpa [#allocation13], 1

</llo_original>
